<compile_context>
chip_gen: v5e
topology: v5e:2x2
jax: 0.10.0
libtpu: 0.0.40
codegen_flags: <defaults>
</compile_context>

<pallas_src>
import math

import jax
import jax.numpy as jnp
from jax.experimental import pallas as pl
from jax.experimental.pallas import tpu as pltpu


def _centered_grad_kernel(ax_ref, bx_ref, cx_ref, ay_ref, by_ref, cy_ref,
                          x_ref, dx_ref, dy_ref):
    """One block of TB images flattened to (RB, W) with RB = TB*H.

    diff_x = Ax * x[:, j-1] + Bx * x[:, j] + Cx * x[:, j+1]   (Ax/Bx/Cx: (1, W), per lane)
    diff_y = Ay * x[i-1, :] + By * x[i, :] + Cy * x[i+1, :]   (Ay/By/Cy: (RB, 1), per sublane)

    Shifted operands come from XLU rotates; every wrapped value (image edge or a row
    belonging to the adjacent image in the flattened layout) is multiplied by a zero
    coefficient, so it never contributes.
    """
    x = x_ref[...]                         # (RB, W)
    rb, w = x.shape

    # horizontal (lane) stencil
    x_l = pltpu.roll(x, 1, axis=1)         # x[:, j-1]  (wraps at j=0; coeff is 0 there)
    x_r = pltpu.roll(x, w - 1, axis=1)     # x[:, j+1]  (wraps at j=W-1; coeff is 0 there)
    dx_ref[...] = ax_ref[...] * x_l + bx_ref[...] * x + cx_ref[...] * x_r

    # vertical (sublane) stencil
    x_u = pltpu.roll(x, 1, axis=0)         # x[i-1, :]
    x_d = pltpu.roll(x, rb - 1, axis=0)    # x[i+1, :]
    dy_ref[...] = ay_ref[...] * x_u + by_ref[...] * x + cy_ref[...] * x_d


def _stencil_coeffs(w3, n):
    """Per-position 3-tap coefficients with the module's hard-coded 0.5 boundaries."""
    a = jnp.full((n,), w3[0], dtype=jnp.float32)
    b = jnp.full((n,), w3[1], dtype=jnp.float32)
    c = jnp.full((n,), w3[2], dtype=jnp.float32)
    a = a.at[0].set(0.0).at[n - 1].set(-0.5)
    b = b.at[0].set(-0.5).at[n - 1].set(0.5)
    c = c.at[0].set(0.5).at[n - 1].set(0.0)
    return a, b, c


def centered_grad(x, wx, wy, *, target_block_bytes=1 << 20):
    """x: (B, C, H, W) with C == 1 (matches nn.Conv2d(1, 1, ...)). Returns (diff_x, diff_y)."""
    assert x.ndim == 4
    B, C, H, W = x.shape
    assert H >= 2 and W >= 2
    N = B * C
    dtype = x.dtype
    itemsize = jnp.dtype(dtype).itemsize

    # --- choose how many images to pack into one grid step --------------------------
    # Resident VMEM ~= (1 in + 2 out) * 2 pipeline buffers * tb*H*W*itemsize, so a
    # ~1 MiB input block keeps us around 6-7 MiB: under the default scoped-VMEM limit
    # on every generation (v5e 16 MiB, v6e/v7x 32 MiB) while large enough to hide the
    # per-step overhead.  tb*H must be a multiple of 8 (sublane tiling).
    step = 8 // math.gcd(H, 8)
    tb = max(1, target_block_bytes // (H * W * itemsize))
    tb = max(step, (tb // step) * step)
    tb = min(tb, -(-N // step) * step)          # don't pad the batch more than needed
    n_pad = -(-N // tb) * tb                    # N rounded up to a multiple of tb
    grid = n_pad // tb
    rb = tb * H                                 # sublane rows per block

    xf = x.reshape(N, H, W)
    if n_pad != N:
        xf = jnp.concatenate([xf, jnp.zeros((n_pad - N, H, W), dtype)], axis=0)
    xf = xf.reshape(n_pad * H, W)

    # --- boundary-aware stencil coefficients (replaces iota/where inside the kernel) --
    wx = jnp.asarray(wx, jnp.float32).reshape(-1)
    wy = jnp.asarray(wy, jnp.float32).reshape(-1)
    ax, bx, cx = tuple(v.reshape(1, W).astype(dtype) for v in _stencil_coeffs(wx, W))
    ayh, byh, cyh = _stencil_coeffs(wy, H)
    ay, by, cy = tuple(jnp.tile(v, tb).reshape(rb, 1).astype(dtype)
                       for v in (ayh, byh, cyh))

    coef_x_spec = pl.BlockSpec((1, W), lambda i: (0, 0))      # resident across grid steps
    coef_y_spec = pl.BlockSpec((rb, 1), lambda i: (0, 0))
    img_spec = pl.BlockSpec((rb, W), lambda i: (i, 0))

    cost = pl.CostEstimate(
        flops=10 * N * H * W,
        transcendentals=0,
        bytes_accessed=3 * N * H * W * itemsize,
    )

    dx, dy = pl.pallas_call(
        _centered_grad_kernel,
        out_shape=(jax.ShapeDtypeStruct((n_pad * H, W), dtype),
                   jax.ShapeDtypeStruct((n_pad * H, W), dtype)),
        grid=(grid,),
        in_specs=[coef_x_spec, coef_x_spec, coef_x_spec,
                  coef_y_spec, coef_y_spec, coef_y_spec,
                  img_spec],
        out_specs=(img_spec, img_spec),
        compiler_params=pltpu.CompilerParams(
            dimension_semantics=("parallel",)),   # shard blocks across v7x's 2 TCs
        cost_estimate=cost,
    )(ax, bx, cx, ay, by, cy, xf)

    dx = dx.reshape(n_pad, H, W)[:N].reshape(B, C, H, W)
    dy = dy.reshape(n_pad, H, W)[:N].reshape(B, C, H, W)
    return dx, dy


def _reference(x, wx, wy):
    """Pure-JAX transcription of the PyTorch forward (zero-padded conv + boundary overwrite)."""
    wx = jnp.asarray(wx, x.dtype).reshape(-1)
    wy = jnp.asarray(wy, x.dtype).reshape(-1)
    zc = jnp.zeros_like(x[..., :1])
    xl = jnp.concatenate([zc, x[..., :-1]], axis=-1)
    xr = jnp.concatenate([x[..., 1:], zc], axis=-1)
    dx = wx[0] * xl + wx[1] * x + wx[2] * xr
    dx = dx.at[..., 0:1].set(0.5 * (x[..., 1:2] - x[..., 0:1]))
    dx = dx.at[..., -1:].set(0.5 * (x[..., -1:] - x[..., -2:-1]))

    zr = jnp.zeros_like(x[..., :1, :])
    xu = jnp.concatenate([zr, x[..., :-1, :]], axis=-2)
    xd = jnp.concatenate([x[..., 1:, :], zr], axis=-2)
    dy = wy[0] * xu + wy[1] * x + wy[2] * xd
    dy = dy.at[..., 0:1, :].set(0.5 * (x[..., 1:2, :] - x[..., 0:1, :]))
    dy = dy.at[..., -1:, :].set(0.5 * (x[..., -1:, :] - x[..., -2:-1, :]))
    return dx, dy


if __name__ == "__main__":
    key = jax.random.PRNGKey(0)
    k1, k2 = jax.random.split(key)

    # Module's deterministic init: Conv2d(1,1,(1,3)) / Conv2d(1,1,(3,1)) weights, flattened.
    wx0 = jnp.array([-0.5, 0.0, 0.5], dtype=jnp.float32)
    wy0 = jnp.array([-0.5, 0.0, 0.5], dtype=jnp.float32)

    # Case 1: small shape, single block (C must be 1 for Conv2d(1, 1, ...)).
    x1 = jax.random.normal(k1, (2, 1, 16, 128), dtype=jnp.float32)
    dx1, dy1 = centered_grad(x1, wx0, wy0)
    jax.block_until_ready((dx1, dy1))
    rdx1, rdy1 = _reference(x1, wx0, wy0)
    assert dx1.shape == x1.shape and dy1.shape == x1.shape
    assert jnp.allclose(dx1, rdx1, atol=1e-6), "diff_x mismatch (case 1)"
    assert jnp.allclose(dy1, rdy1, atol=1e-6), "diff_y mismatch (case 1)"

    # Case 2: multi-step grid with batch padding (tb forced to 2 for N=5) and
    # asymmetric "trained" conv weights to exercise the general stencil path.
    wx1 = jnp.array([-0.4, 0.1, 0.6], dtype=jnp.float32)
    wy1 = jnp.array([-0.3, 0.2, 0.7], dtype=jnp.float32)
    x2 = jax.random.normal(k2, (5, 1, 24, 256), dtype=jnp.float32)
    dx2, dy2 = centered_grad(x2, wx1, wy1, target_block_bytes=2 * 24 * 256 * 4)
    jax.block_until_ready((dx2, dy2))
    rdx2, rdy2 = _reference(x2, wx1, wy1)
    assert jnp.allclose(dx2, rdx2, atol=1e-6), "diff_x mismatch (case 2)"
    assert jnp.allclose(dy2, rdy2, atol=1e-6), "diff_y mismatch (case 2)"

    print("KERNEL_OK")
</pallas_src>

<mosaic_0001>
module attributes {stable_mosaic.version = 11 : i64} {
  func.func @_centered_grad_kernel(%arg0: i32, %arg1: memref<1x128xf32, #tpu.memory_space<vmem>>, %arg2: memref<1x128xf32, #tpu.memory_space<vmem>>, %arg3: memref<1x128xf32, #tpu.memory_space<vmem>>, %arg4: memref<32x1xf32, #tpu.memory_space<vmem>>, %arg5: memref<32x1xf32, #tpu.memory_space<vmem>>, %arg6: memref<32x1xf32, #tpu.memory_space<vmem>>, %arg7: memref<32x128xf32, #tpu.memory_space<vmem>>, %arg8: memref<32x128xf32, #tpu.memory_space<vmem>>, %arg9: memref<32x128xf32, #tpu.memory_space<vmem>>) attributes {dimension_semantics = [#tpu.dimension_semantics<parallel>], iteration_bounds = array<i64: 1>, scalar_prefetch = 0 : i64, scratch_operands = 0 : i64, tpu.core_type = #tpu.core_type<tc>, window_params = [{pipeline_mode = #tpu.pipeline_mode<synchronous>, transform_indices = @transform_0, window_bounds = array<i64: 1, 128>}, {pipeline_mode = #tpu.pipeline_mode<synchronous>, transform_indices = @transform_1, window_bounds = array<i64: 1, 128>}, {pipeline_mode = #tpu.pipeline_mode<synchronous>, transform_indices = @transform_2, window_bounds = array<i64: 1, 128>}, {pipeline_mode = #tpu.pipeline_mode<synchronous>, transform_indices = @transform_3, window_bounds = array<i64: 32, 1>}, {pipeline_mode = #tpu.pipeline_mode<synchronous>, transform_indices = @transform_4, window_bounds = array<i64: 32, 1>}, {pipeline_mode = #tpu.pipeline_mode<synchronous>, transform_indices = @transform_5, window_bounds = array<i64: 32, 1>}, {transform_indices = @transform_6, window_bounds = array<i64: 32, 128>}, {transform_indices = @transform_7, window_bounds = array<i64: 32, 128>}, {transform_indices = @transform_8, window_bounds = array<i64: 32, 128>}]} {
    %c0 = arith.constant 0 : index
    %c0_0 = arith.constant 0 : index
    %0 = vector.load %arg7[%c0, %c0_0] : memref<32x128xf32, #tpu.memory_space<vmem>>, vector<32x128xf32>
    %c1_i32 = arith.constant 1 : i32
    %1 = tpu.dynamic_rotate %0 by %c1_i32 dim 1 : vector<32x128xf32>, i32 -> vector<32x128xf32>
    %c127_i32 = arith.constant 127 : i32
    %2 = tpu.dynamic_rotate %0 by %c127_i32 dim 1 : vector<32x128xf32>, i32 -> vector<32x128xf32>
    %c0_1 = arith.constant 0 : index
    %c0_2 = arith.constant 0 : index
    %3 = vector.load %arg1[%c0_1, %c0_2] : memref<1x128xf32, #tpu.memory_space<vmem>>, vector<1x128xf32>
    %4 = vector.broadcast %3 : vector<1x128xf32> to vector<32x128xf32>
    %5 = arith.mulf %4, %1 : vector<32x128xf32>
    %c0_3 = arith.constant 0 : index
    %c0_4 = arith.constant 0 : index
    %6 = vector.load %arg2[%c0_3, %c0_4] : memref<1x128xf32, #tpu.memory_space<vmem>>, vector<1x128xf32>
    %7 = vector.broadcast %6 : vector<1x128xf32> to vector<32x128xf32>
    %8 = arith.mulf %7, %0 : vector<32x128xf32>
    %9 = arith.addf %5, %8 : vector<32x128xf32>
    %c0_5 = arith.constant 0 : index
    %c0_6 = arith.constant 0 : index
    %10 = vector.load %arg3[%c0_5, %c0_6] : memref<1x128xf32, #tpu.memory_space<vmem>>, vector<1x128xf32>
    %11 = vector.broadcast %10 : vector<1x128xf32> to vector<32x128xf32>
    %12 = arith.mulf %11, %2 : vector<32x128xf32>
    %13 = arith.addf %9, %12 : vector<32x128xf32>
    %c0_7 = arith.constant 0 : index
    %c0_8 = arith.constant 0 : index
    %14 = vector.load %arg8[%c0_7, %c0_8] : memref<32x128xf32, #tpu.memory_space<vmem>>, vector<32x128xf32>
    tpu.vector_store %arg8[%c0_7, %c0_8], %13 {strides = array<i32>} : memref<32x128xf32, #tpu.memory_space<vmem>>, vector<32x128xf32>,
    %c1_i32_9 = arith.constant 1 : i32
    %15 = tpu.dynamic_rotate %0 by %c1_i32_9 dim 0 : vector<32x128xf32>, i32 -> vector<32x128xf32>
    %c31_i32 = arith.constant 31 : i32
    %16 = tpu.dynamic_rotate %0 by %c31_i32 dim 0 : vector<32x128xf32>, i32 -> vector<32x128xf32>
    %c0_10 = arith.constant 0 : index
    %c0_11 = arith.constant 0 : index
    %17 = vector.load %arg4[%c0_10, %c0_11] : memref<32x1xf32, #tpu.memory_space<vmem>>, vector<32x1xf32>
    %18 = vector.broadcast %17 : vector<32x1xf32> to vector<32x128xf32>
    %19 = arith.mulf %18, %15 : vector<32x128xf32>
    %c0_12 = arith.constant 0 : index
    %c0_13 = arith.constant 0 : index
    %20 = vector.load %arg5[%c0_12, %c0_13] : memref<32x1xf32, #tpu.memory_space<vmem>>, vector<32x1xf32>
    %21 = vector.broadcast %20 : vector<32x1xf32> to vector<32x128xf32>
    %22 = arith.mulf %21, %0 : vector<32x128xf32>
    %23 = arith.addf %19, %22 : vector<32x128xf32>
    %c0_14 = arith.constant 0 : index
    %c0_15 = arith.constant 0 : index
    %24 = vector.load %arg6[%c0_14, %c0_15] : memref<32x1xf32, #tpu.memory_space<vmem>>, vector<32x1xf32>
    %25 = vector.broadcast %24 : vector<32x1xf32> to vector<32x128xf32>
    %26 = arith.mulf %25, %16 : vector<32x128xf32>
    %27 = arith.addf %23, %26 : vector<32x128xf32>
    %c0_16 = arith.constant 0 : index
    %c0_17 = arith.constant 0 : index
    %28 = vector.load %arg9[%c0_16, %c0_17] : memref<32x128xf32, #tpu.memory_space<vmem>>, vector<32x128xf32>
    tpu.vector_store %arg9[%c0_16, %c0_17], %27 {strides = array<i32>} : memref<32x128xf32, #tpu.memory_space<vmem>>, vector<32x128xf32>,
    return
  }
  func.func @transform_0(%arg0: i32) -> (i32, i32) {
    %c0_i32 = arith.constant 0 : i32
    %c0_i32_0 = arith.constant 0 : i32
    %c0_i32_1 = arith.constant 0 : i32
    return %c0_i32, %c0_i32_0 : i32, i32
  }
  func.func @transform_1(%arg0: i32) -> (i32, i32) {
    %c0_i32 = arith.constant 0 : i32
    %c0_i32_0 = arith.constant 0 : i32
    %c0_i32_1 = arith.constant 0 : i32
    return %c0_i32, %c0_i32_0 : i32, i32
  }
  func.func @transform_2(%arg0: i32) -> (i32, i32) {
    %c0_i32 = arith.constant 0 : i32
    %c0_i32_0 = arith.constant 0 : i32
    %c0_i32_1 = arith.constant 0 : i32
    return %c0_i32, %c0_i32_0 : i32, i32
  }
  func.func @transform_3(%arg0: i32) -> (i32, i32) {
    %c0_i32 = arith.constant 0 : i32
    %c0_i32_0 = arith.constant 0 : i32
    %c0_i32_1 = arith.constant 0 : i32
    return %c0_i32, %c0_i32_0 : i32, i32
  }
  func.func @transform_4(%arg0: i32) -> (i32, i32) {
    %c0_i32 = arith.constant 0 : i32
    %c0_i32_0 = arith.constant 0 : i32
    %c0_i32_1 = arith.constant 0 : i32
    return %c0_i32, %c0_i32_0 : i32, i32
  }
  func.func @transform_5(%arg0: i32) -> (i32, i32) {
    %c0_i32 = arith.constant 0 : i32
    %c0_i32_0 = arith.constant 0 : i32
    %c0_i32_1 = arith.constant 0 : i32
    return %c0_i32, %c0_i32_0 : i32, i32
  }
  func.func @transform_6(%arg0: i32) -> (i32, i32) {
    %c0_i32 = arith.constant 0 : i32
    %c0_i32_0 = arith.constant 0 : i32
    return %arg0, %c0_i32 : i32, i32
  }
  func.func @transform_7(%arg0: i32) -> (i32, i32) {
    %c0_i32 = arith.constant 0 : i32
    %c0_i32_0 = arith.constant 0 : i32
    return %arg0, %c0_i32 : i32, i32
  }
  func.func @transform_8(%arg0: i32) -> (i32, i32) {
    %c0_i32 = arith.constant 0 : i32
    %c0_i32_0 = arith.constant 0 : i32
    return %arg0, %c0_i32 : i32, i32
  }
}

</mosaic_0001>

<llo_original>
// kernel: tpu_custom_call.1
$region0: #{tpu_custom_call.1}
  #allocation0 [shape = 'u32[]', space=smem, size = 0x4, offset = 0x4, fixed_abs, tag = 'smem constant byte address 0x4 - core index']
  #allocation1 [shape = 'u32[72,128]{1,0:T(1,128)}', space=vmem, size = 0x9000, scoped, tag = 'internal scratch']
  %s0 = inlined_call_operand.vmem [shape: f32[1,128], index: 0, kind: input, shape index: {}]
  %s1 = inlined_call_operand.vmem [shape: f32[1,128], index: 1, kind: input, shape index: {}]
  %s2 = inlined_call_operand.vmem [shape: f32[1,128], index: 2, kind: input, shape index: {}]
  %s3 = inlined_call_operand.vmem [shape: f32[32,1], index: 3, kind: input, shape index: {}]
  %s4 = inlined_call_operand.vmem [shape: f32[32,1], index: 4, kind: input, shape index: {}]
  %s5 = inlined_call_operand.vmem [shape: f32[32,1], index: 5, kind: input, shape index: {}]
  %s6 = inlined_call_operand.vmem [shape: f32[32,128], index: 6, kind: input, shape index: {}]
  %s7 = inlined_call_operand.hbm [shape: f32[32,128], index: 7, kind: output, shape index: {0}]
  %s8 = inlined_call_operand.hbm [shape: f32[32,128], index: 8, kind: output, shape index: {1}]
  %9 = xla_tuple %s7, %s8
  %s10 = sld [smem:[#allocation0]]
  $region46: #{tpu_custom_call.1} parent=0
    _
  %s12 = ssub.s32 1, %s10
  %s13 = scalar_select 0, %s12, %s10
  $region1: #{tpu_custom_call.1} parent=0
    #allocation2 [shape = 'u8[16384]{0}', space=vmem, size = 0x4000, scoped, tag = 'output window, operand 0, single buffered']
    #allocation3 [shape = 's32[1]{0}', space=sflag, size = 0x4, scoped, tag = 'scoped memory for tpu_custom_call.1']
    #allocation4 [shape = 'u8[16384]{0}', space=vmem, size = 0x4000, scoped, tag = 'output window, operand 1, single buffered']
    #allocation5 [shape = 's32[1]{0}', space=sflag, size = 0x4, scoped, tag = 'scoped memory for tpu_custom_call.1']
    %14 = vsyncpa [#allocation3], 0
    %15 = vsyncpa [#allocation5], 0
    // Predicated region
    $region2: #{tpu_custom_call.1} parent=1 // pred_check
      _
    $region3: #{tpu_custom_call.1} parent=1 // pred_check_branch
      %17 = sbr.rel (0) target = $region5
    $region4: #{tpu_custom_call.1} parent=1 // pred_region
      _
    $region5: #{tpu_custom_call.1} parent=1 // pred_fallthru
      _
    // Predicated region
    $region6: #{tpu_custom_call.1} parent=1 // pred_check
      _
    $region7: #{tpu_custom_call.1} parent=1 // pred_check_branch
      %19 = sbr.rel (0) target = $region9
    $region8: #{tpu_custom_call.1} parent=1 // pred_region
      _
    $region9: #{tpu_custom_call.1} parent=1 // pred_fallthru
      _
    // Predicated region
    $region10: #{tpu_custom_call.1} parent=1 // pred_check
      _
    $region11: #{tpu_custom_call.1} parent=1 // pred_check_branch
      %21 = sbr.rel (0) target = $region13
    $region12: #{tpu_custom_call.1} parent=1 // pred_region
      _
    $region13: #{tpu_custom_call.1} parent=1 // pred_fallthru
      _
    // Predicated region
    $region14: #{tpu_custom_call.1} parent=1 // pred_check
      _
    $region15: #{tpu_custom_call.1} parent=1 // pred_check_branch
      %23 = sbr.rel (0) target = $region17
    $region16: #{tpu_custom_call.1} parent=1 // pred_region
      _
    $region17: #{tpu_custom_call.1} parent=1 // pred_fallthru
      _
    // Predicated region
    $region18: #{tpu_custom_call.1} parent=1 // pred_check
      _
    $region19: #{tpu_custom_call.1} parent=1 // pred_check_branch
      %25 = sbr.rel (0) target = $region21
    $region20: #{tpu_custom_call.1} parent=1 // pred_region
      _
    $region21: #{tpu_custom_call.1} parent=1 // pred_fallthru
      _
    // Predicated region
    $region22: #{tpu_custom_call.1} parent=1 // pred_check
      _
    $region23: #{tpu_custom_call.1} parent=1 // pred_check_branch
      %27 = sbr.rel (0) target = $region25
    $region24: #{tpu_custom_call.1} parent=1 // pred_region
      _
    $region25: #{tpu_custom_call.1} parent=1 // pred_fallthru
      _
    // Predicated region
    $region26: #{tpu_custom_call.1} parent=1 // pred_check
      _
    $region27: #{tpu_custom_call.1} parent=1 // pred_check_branch
      %29 = sbr.rel (0) target = $region29
    $region28: #{tpu_custom_call.1} parent=1 // pred_region
      _
    $region29: #{tpu_custom_call.1} parent=1 // pred_fallthru
      _
    %v30 = vld [vmem:[%s6] sm:$0xff]
    %v31 = vld [vmem:[%s6 + $0x8] sm:$0xff]
    %v32 = vld [vmem:[%s6 + $0x10] sm:$0xff]
    %v33 = vld [vmem:[%s6 + $0x18] sm:$0xff]
    %34 = vrot.lane.b32.xlu0 %v30, 1
    %v35 = vpop.permute.xlu0 %34
    %36 = vrot.lane.b32.xlu0 %v31, 1
    %v37 = vpop.permute.xlu0 %36
    %38 = vrot.lane.b32.xlu0 %v32, 1
    %v39 = vpop.permute.xlu0 %38
    %40 = vrot.lane.b32.xlu0 %v33, 1
    %v41 = vpop.permute.xlu0 %40
    %42 = vrot.lane.b32.xlu0 %v30, 127
    %v43 = vpop.permute.xlu0 %42
    %44 = vrot.lane.b32.xlu0 %v31, 127
    %v45 = vpop.permute.xlu0 %44
    %46 = vrot.lane.b32.xlu0 %v32, 127
    %v47 = vpop.permute.xlu0 %46
    %48 = vrot.lane.b32.xlu0 %v33, 127
    %v49 = vpop.permute.xlu0 %48
    %v50 = vld [vmem:[%s0] sm:$0x1]
    %v52 = vperm.slane %v50, 0
    %v54 = vmul.f32 %v52, %v35
    %v55 = vmul.f32 %v52, %v37
    %v56 = vmul.f32 %v52, %v39
    %v57 = vmul.f32 %v52, %v41
    %v58 = vld [vmem:[%s1] sm:$0x1]
    %v60 = vperm.slane %v58, 0
    %v62 = vmul.f32 %v60, %v30
    %v63 = vmul.f32 %v60, %v31
    %v64 = vmul.f32 %v60, %v32
    %v65 = vmul.f32 %v60, %v33
    %v66 = vadd.f32 %v54, %v62
    %v67 = vadd.f32 %v55, %v63
    %v68 = vadd.f32 %v56, %v64
    %v69 = vadd.f32 %v57, %v65
    %v70 = vld [vmem:[%s2] sm:$0x1]
    %v72 = vperm.slane %v70, 0
    %v74 = vmul.f32 %v72, %v43
    %v75 = vmul.f32 %v72, %v45
    %v76 = vmul.f32 %v72, %v47
    %v77 = vmul.f32 %v72, %v49
    %v78 = vadd.f32 %v66, %v74
    %v79 = vadd.f32 %v67, %v75
    %v80 = vadd.f32 %v68, %v76
    %v81 = vadd.f32 %v69, %v77
    %82 = vst [vmem:[#allocation2] sm:$0xff] %v78
    %83 = vst [vmem:[#allocation2 + $0x8] sm:$0xff] %v79
    %84 = vst [vmem:[#allocation2 + $0x10] sm:$0xff] %v80
    %85 = vst [vmem:[#allocation2 + $0x18] sm:$0xff] %v81
    %v86 = vrot.slane %v30, 7
    %v87 = vrot.slane %v31, 7
    %v88 = vrot.slane %v32, 7
    %v89 = vrot.slane %v33, 7
    %v90 = vlaneseq
    %v91 = vshrl.u32 %v90, 7
    %vm92 = vcmp.lt.s32.totalorder %v91, 1
    %v93 = vsel %vm92, %v88, %v89
    %v94 = vsel %vm92, %v87, %v88
    %v95 = vsel %vm92, %v86, %v87
    %v96 = vsel %vm92, %v89, %v86
    %v97 = vrot.slane %v30, 1
    %v98 = vrot.slane %v31, 1
    %v99 = vrot.slane %v32, 1
    %v100 = vrot.slane %v33, 1
    %vm101 = vcmp.lt.s32.totalorder %v91, 7
    %v102 = vsel %vm101, %v99, %v100
    %v103 = vsel %vm101, %v98, %v99
    %v104 = vsel %vm101, %v97, %v98
    %v105 = vsel %vm101, %v100, %v97
    %v106 = vld [vmem:[%s3] sm:$0xff]
    %v107 = vld [vmem:[%s3 + $0x8] sm:$0xff]
    %v108 = vld [vmem:[%s3 + $0x10] sm:$0xff]
    %v109 = vld [vmem:[%s3 + $0x18] sm:$0xff]
    %111 = vset.pattern.permute.xlu0 0
    %112 = vperm.xlu0 %111, %v106
    %v113 = vpop.permute.xlu0 %112
    %116 = vset.pattern.permute.xlu0 0
    %117 = vperm.xlu0 %116, %v107
    %v118 = vpop.permute.xlu0 %117
    %121 = vset.pattern.permute.xlu0 0
    %122 = vperm.xlu0 %121, %v108
    %v123 = vpop.permute.xlu0 %122
    %126 = vset.pattern.permute.xlu0 0
    %127 = vperm.xlu0 %126, %v109
    %v128 = vpop.permute.xlu0 %127
    %v130 = vmul.f32 %v113, %v96
    %v131 = vmul.f32 %v118, %v95
    %v132 = vmul.f32 %v123, %v94
    %v133 = vmul.f32 %v128, %v93
    %v134 = vld [vmem:[%s4] sm:$0xff]
    %v135 = vld [vmem:[%s4 + $0x8] sm:$0xff]
    %v136 = vld [vmem:[%s4 + $0x10] sm:$0xff]
    %v137 = vld [vmem:[%s4 + $0x18] sm:$0xff]
    %139 = vset.pattern.permute.xlu0 0
    %140 = vperm.xlu0 %139, %v134
    %v141 = vpop.permute.xlu0 %140
    %144 = vset.pattern.permute.xlu0 0
    %145 = vperm.xlu0 %144, %v135
    %v146 = vpop.permute.xlu0 %145
    %149 = vset.pattern.permute.xlu0 0
    %150 = vperm.xlu0 %149, %v136
    %v151 = vpop.permute.xlu0 %150
    %154 = vset.pattern.permute.xlu0 0
    %155 = vperm.xlu0 %154, %v137
    %v156 = vpop.permute.xlu0 %155
    %v158 = vmul.f32 %v141, %v30
    %v159 = vmul.f32 %v146, %v31
    %v160 = vmul.f32 %v151, %v32
    %v161 = vmul.f32 %v156, %v33
    %v162 = vadd.f32 %v130, %v158
    %v163 = vadd.f32 %v131, %v159
    %v164 = vadd.f32 %v132, %v160
    %v165 = vadd.f32 %v133, %v161
    %v166 = vld [vmem:[%s5] sm:$0xff]
    %v167 = vld [vmem:[%s5 + $0x8] sm:$0xff]
    %v168 = vld [vmem:[%s5 + $0x10] sm:$0xff]
    %v169 = vld [vmem:[%s5 + $0x18] sm:$0xff]
    %171 = vset.pattern.permute.xlu0 0
    %172 = vperm.xlu0 %171, %v166
    %v173 = vpop.permute.xlu0 %172
    %176 = vset.pattern.permute.xlu0 0
    %177 = vperm.xlu0 %176, %v167
    %v178 = vpop.permute.xlu0 %177
    %181 = vset.pattern.permute.xlu0 0
    %182 = vperm.xlu0 %181, %v168
    %v183 = vpop.permute.xlu0 %182
    %186 = vset.pattern.permute.xlu0 0
    %187 = vperm.xlu0 %186, %v169
    %v188 = vpop.permute.xlu0 %187
    %v190 = vmul.f32 %v173, %v104
    %v191 = vmul.f32 %v178, %v103
    %v192 = vmul.f32 %v183, %v102
    %v193 = vmul.f32 %v188, %v105
    %v194 = vadd.f32 %v162, %v190
    %v195 = vadd.f32 %v163, %v191
    %v196 = vadd.f32 %v164, %v192
    %v197 = vadd.f32 %v165, %v193
    %198 = vst [vmem:[#allocation4] sm:$0xff] %v194
    %199 = vst [vmem:[#allocation4 + $0x8] sm:$0xff] %v195
    %200 = vst [vmem:[#allocation4 + $0x10] sm:$0xff] %v196
    %201 = vst [vmem:[#allocation4 + $0x18] sm:$0xff] %v197
    // Predicated region
    $region30: #{tpu_custom_call.1} parent=1 // pred_check
      _
    $region31: #{tpu_custom_call.1} parent=1 // pred_check_branch
      %203 = sbr.rel (0) target = $region33
    $region32: #{tpu_custom_call.1} parent=1 // pred_region
      %205 = vsyncadd [#allocation3], 0
      %s206 = sshll.u32 [#allocation2], 4
      %s207 = int_to_ptr.vmem [resolvable:$true] %s206
      %s208 = sshll.u32 %s7, 4
      %s209 = int_to_ptr.hbm [resolvable:$true] %s208
      %214 = dma.vmem_to_hbm [thread:$0]  %s207, 512, %s209, [#allocation3], 128, 128, 8
    $region33: #{tpu_custom_call.1} parent=1 // pred_fallthru
      _
    // Predicated region
    $region34: #{tpu_custom_call.1} parent=1 // pred_check
      _
    $region35: #{tpu_custom_call.1} parent=1 // pred_check_branch
      %216 = sbr.rel (0) target = $region37
    $region36: #{tpu_custom_call.1} parent=1 // pred_region
      %218 = vsyncadd [#allocation5], 0
      %s219 = sshll.u32 [#allocation4], 4
      %s220 = int_to_ptr.vmem [resolvable:$true] %s219
      %s221 = sshll.u32 %s8, 4
      %s222 = int_to_ptr.hbm [resolvable:$true] %s221
      %227 = dma.vmem_to_hbm [thread:$0]  %s220, 512, %s222, [#allocation5], 128, 128, 8
    $region37: #{tpu_custom_call.1} parent=1 // pred_fallthru
      _
    // Predicated region
    $region38: #{tpu_custom_call.1} parent=1 // pred_check
      _
    $region39: #{tpu_custom_call.1} parent=1 // pred_check_branch
      %229 = sbr.rel (0) target = $region41
    $region40: #{tpu_custom_call.1} parent=1 // pred_region
      %231 = dma.done [#allocation3], 512
    $region41: #{tpu_custom_call.1} parent=1 // pred_fallthru
      _
    // Predicated region
    $region42: #{tpu_custom_call.1} parent=1 // pred_check
      _
    $region43: #{tpu_custom_call.1} parent=1 // pred_check_branch
      %233 = sbr.rel (0) target = $region45
    $region44: #{tpu_custom_call.1} parent=1 // pred_region
      %235 = dma.done [#allocation5], 512
    $region45: #{tpu_custom_call.1} parent=1 // pred_fallthru
      _
    %236 = vsyncpa [#allocation3], 1
    %237 = vsyncpa [#allocation5], 1

</llo_original>
